<compile_context>
chip_gen: v6e
topology: v6e:2x2x1
jax: 0.10.0
libtpu: 0.0.40
codegen_flags: <defaults>
</compile_context>

<pallas_src>
import functools

import jax
import jax.numpy as jnp
from jax.experimental import pallas as pl
from jax.experimental.pallas import tpu as pltpu


def _round_up(x, m):
    return ((x + m - 1) // m) * m


def _pad2(x, rows, cols):
    r, c = x.shape
    return jnp.pad(x, ((0, rows - r), (0, cols - c)))


# ---------------------------------------------------------------------------
# Kernel 1: tiled matmul  T = X @ W  (transform-first path).
# ---------------------------------------------------------------------------
def _matmul_kernel(x_ref, w_ref, o_ref, acc_ref):
    k = pl.program_id(1)

    @pl.when(k == 0)
    def _():
        acc_ref[...] = jnp.zeros_like(acc_ref)

    acc_ref[...] += jnp.dot(x_ref[...], w_ref[...],
                            preferred_element_type=jnp.float32)

    @pl.when(k == pl.num_programs(1) - 1)
    def _():
        o_ref[...] = acc_ref[...].astype(o_ref.dtype)


def _matmul(x, w, *, out_dtype, tm, tk):
    """x: [M, K] bf16, w: [K, N] bf16 (N small, resident per reduction chunk)."""
    m, kdim = x.shape
    n = w.shape[1]
    grid = (m // tm, kdim // tk)

    est = (2 * tm * tk * x.dtype.itemsize
           + 2 * tk * n * w.dtype.itemsize
           + 2 * tm * n * jnp.dtype(out_dtype).itemsize
           + tm * n * 4)
    vmem_limit = int(min(48 << 20, max(16 << 20, 3 * est)))

    return pl.pallas_call(
        _matmul_kernel,
        out_shape=jax.ShapeDtypeStruct((m, n), out_dtype),
        grid=grid,
        in_specs=[pl.BlockSpec((tm, tk), lambda i, k: (i, k)),
                  pl.BlockSpec((tk, n), lambda i, k: (k, 0))],
        out_specs=pl.BlockSpec((tm, n), lambda i, k: (i, 0)),
        scratch_shapes=[pltpu.VMEM((tm, n), jnp.float32)],
        compiler_params=pltpu.CompilerParams(
            dimension_semantics=("parallel", "arbitrary"),
            vmem_limit_bytes=vmem_limit),
    )(x, w)


# ---------------------------------------------------------------------------
# Kernel 2: aggregation (+ optional fused transform) + bias/ReLU/dropout.
#   fuse_w=True : out = post( (sum_k A[i,k] @ M[k,:]) @ W + b )
#   fuse_w=False: out = post(  sum_k A[i,k] @ T[k,:]       + b )   (T = X @ W)
# ---------------------------------------------------------------------------
def _gcn_layer_kernel(*refs, relu, dropout, fuse_w):
    if fuse_w:
        a_ref, m_ref, w_ref, b_ref, *rest = refs
    else:
        a_ref, m_ref, b_ref, *rest = refs
        w_ref = None
    if dropout:
        mask_ref, o_ref, acc_ref = rest
    else:
        o_ref, acc_ref = rest
        mask_ref = None

    k = pl.program_id(1)

    @pl.when(k == 0)
    def _():
        acc_ref[...] = jnp.zeros_like(acc_ref)

    # aggregate: A_hat row-tile (bf16) @ feature chunk (bf16) -> f32 acc
    acc_ref[...] += jnp.dot(a_ref[...], m_ref[...],
                            preferred_element_type=jnp.float32)

    @pl.when(k == pl.num_programs(1) - 1)
    def _():
        h = acc_ref[...]
        if fuse_w:
            h = jnp.dot(h, w_ref[...], preferred_element_type=jnp.float32)
        h = h + b_ref[...]
        if relu:
            h = jnp.maximum(h, 0.0)
        if dropout:
            # mask holds 0.0 (dropped) or 2.0 (kept * 1/(1-p)); one multiply.
            h = h * mask_ref[...]
        o_ref[...] = h.astype(o_ref.dtype)


def _gcn_layer(a, m, w, b, mask, *, relu, out_dtype, tm, tk):
    """a: [Np,Np] bf16, m: [Np,Din] bf16, w: [Din,Dout] f32 or None (m already
    transformed), b: [1,Dout] f32, mask: [Np,Dout] bf16 or None."""
    n_pad = a.shape[0]
    din = m.shape[1]
    dout = b.shape[1]
    fuse_w = w is not None
    acc_cols = din if fuse_w else dout
    grid = (n_pad // tm, n_pad // tk)

    in_specs = [
        pl.BlockSpec((tm, tk), lambda i, k: (i, k)),      # A_hat tile
        pl.BlockSpec((tk, din), lambda i, k: (k, 0)),     # feature chunk
    ]
    operands = [a, m]
    if fuse_w:
        in_specs.append(pl.BlockSpec((din, dout), lambda i, k: (0, 0)))
        operands.append(w)                                # weights (resident)
    in_specs.append(pl.BlockSpec((1, dout), lambda i, k: (0, 0)))
    operands.append(b)                                    # bias (resident)
    if mask is not None:
        in_specs.append(pl.BlockSpec((tm, dout), lambda i, k: (i, 0)))
        operands.append(mask)                             # dropout mask tile

    out_bytes = jnp.dtype(out_dtype).itemsize
    mask_bytes = 0 if mask is None else mask.dtype.itemsize
    w_bytes = 0 if w is None else din * dout * w.dtype.itemsize
    est = (2 * tm * tk * a.dtype.itemsize          # A tile, double buffered
           + 2 * tk * din * m.dtype.itemsize       # feature chunk
           + 2 * tm * dout * out_bytes             # output tile
           + 2 * tm * dout * mask_bytes            # dropout mask tile
           + w_bytes + dout * 4                    # resident weights / bias
           + tm * acc_cols * 4)                    # f32 accumulator scratch
    vmem_limit = int(min(48 << 20, max(16 << 20, 3 * est)))

    kernel = functools.partial(_gcn_layer_kernel, relu=relu,
                               dropout=mask is not None, fuse_w=fuse_w)

    return pl.pallas_call(
        kernel,
        out_shape=jax.ShapeDtypeStruct((n_pad, dout), out_dtype),
        grid=grid,
        in_specs=in_specs,
        out_specs=pl.BlockSpec((tm, dout), lambda i, k: (i, 0)),
        scratch_shapes=[pltpu.VMEM((tm, acc_cols), jnp.float32)],
        compiler_params=pltpu.CompilerParams(
            dimension_semantics=("parallel", "arbitrary"),
            vmem_limit_bytes=vmem_limit),
    )(*operands)


def _gcn_conv(a, feats, w, b, mask, *, relu, out_dtype, tm, tk):
    """One GCNConv layer, picking the cheaper matmul ordering."""
    din, dout = w.shape
    if dout < din:
        # transform first (fewer columns flow through the O(N^2) aggregation)
        if din % 512 == 0:
            tk_feat = 512
        elif din % 256 == 0:
            tk_feat = 256
        else:
            tk_feat = 128
        t = _matmul(feats, w.astype(jnp.bfloat16), out_dtype=jnp.bfloat16,
                    tm=tm, tk=tk_feat)
        return _gcn_layer(a, t, None, b, mask, relu=relu,
                          out_dtype=out_dtype, tm=tm, tk=tk)
    # aggregate first, transform fused into the epilogue
    return _gcn_layer(a, feats, w, b, mask, relu=relu,
                      out_dtype=out_dtype, tm=tm, tk=tk)


def _normalized_adjacency(edge_index, num_nodes):
    """Dense GCN-normalized adjacency D^-1/2 (A + I) D^-1/2 (plain-JAX glue)."""
    src = edge_index[0]
    dst = edge_index[1]
    a = jnp.zeros((num_nodes, num_nodes), jnp.float32).at[dst, src].add(1.0)
    a = a + jnp.eye(num_nodes, dtype=jnp.float32)          # add self-loops
    deg = a.sum(axis=1)
    d_inv_sqrt = jnp.where(deg > 0.0, jax.lax.rsqrt(deg), 0.0)
    return d_inv_sqrt[:, None] * a * d_inv_sqrt[None, :]


def gcn_forward(x, edge_index, params, *, is_train=True, dropout_key=None):
    """Equivalent of GCN.forward(x, edge_index, is_train)."""
    w1, b1, w2, b2 = params
    n, f = x.shape
    h = w1.shape[1]
    c = w2.shape[1]

    # -- tile sizes over the node-row dimension (fits comfortably under
    #    v7x's 32 MiB scoped / 64 MiB physical VMEM) ------------------------
    if n <= 256:
        tm, tk = 128, 128
    elif n <= 2048:
        tm, tk = 256, 256
    else:
        tm, tk = 256, 512
    n_pad = _round_up(n, max(tm, tk))
    f_pad = _round_up(f, 128)
    h_pad = _round_up(h, 128)
    c_pad = _round_up(c, 128)

    # -- operand prep: pad to lane-dense shapes, bf16 for the O(N^2) operands
    a_hat = _normalized_adjacency(edge_index, n)
    a_pad = _pad2(a_hat, n_pad, n_pad).astype(jnp.bfloat16)
    x_pad = _pad2(x.astype(jnp.float32), n_pad, f_pad).astype(jnp.bfloat16)
    w1_p = _pad2(w1.astype(jnp.float32), f_pad, h_pad)
    b1_p = _pad2(b1.astype(jnp.float32).reshape(1, -1), 1, h_pad)
    w2_p = _pad2(w2.astype(jnp.float32), h_pad, c_pad)
    b2_p = _pad2(b2.astype(jnp.float32).reshape(1, -1), 1, c_pad)

    if is_train:
        if dropout_key is None:
            dropout_key = jax.random.PRNGKey(1234)
        keep = jax.random.bernoulli(dropout_key, 0.5, (n_pad, h_pad))
        mask = keep.astype(jnp.bfloat16) * 2.0       # 0.0 or 1/(1-p)=2.0
    else:
        mask = None

    # layer 1: relu(A @ X @ W1 + b1) with fused dropout; bf16 output feeds
    # straight into layer 2's aggregation matmul.
    h1 = _gcn_conv(a_pad, x_pad, w1_p, b1_p, mask,
                   relu=True, out_dtype=jnp.bfloat16, tm=tm, tk=tk)
    # layer 2: A @ H1 @ W2 + b2
    out = _gcn_conv(a_pad, h1, w2_p, b2_p, None,
                    relu=False, out_dtype=jnp.float32, tm=tm, tk=tk)
    return out[:n, :c]


def init_params(key, num_features, hidden_channels, num_classes):
    """Deterministic (Glorot-ish) parameter init; same shapes as GCNConv."""
    k1, k2 = jax.random.split(key)
    w1 = jax.random.normal(k1, (num_features, hidden_channels), jnp.float32)
    w1 = w1 * (1.0 / jnp.sqrt(jnp.float32(num_features)))
    b1 = jnp.zeros((hidden_channels,), jnp.float32)
    w2 = jax.random.normal(k2, (hidden_channels, num_classes), jnp.float32)
    w2 = w2 * (1.0 / jnp.sqrt(jnp.float32(hidden_channels)))
    b2 = jnp.zeros((num_classes,), jnp.float32)
    return w1, b1, w2, b2


if __name__ == "__main__":
    key = jax.random.PRNGKey(0)
    k_x, k_src, k_dst, k_params, k_drop = jax.random.split(key, 5)

    # small synthetic graph; F > H so layer 1 exercises the transform-first
    # path, layer 2 exercises the fused aggregate-then-transform path.
    N, F, H, C = 16, 200, 32, 4        # nodes, num_features, hidden, classes
    E_half = 20

    x = jax.random.normal(k_x, (N, F), jnp.float32)
    src = jax.random.randint(k_src, (E_half,), 0, N)
    dst = jax.random.randint(k_dst, (E_half,), 0, N)
    # make the edge set symmetric (undirected graph), shape (2, 40)
    edge_index = jnp.stack([jnp.concatenate([src, dst]),
                            jnp.concatenate([dst, src])], axis=0)

    params = init_params(k_params, F, H, C)

    # training-mode forward (with dropout) -- the primary run
    out = gcn_forward(x, edge_index, params, is_train=True, dropout_key=k_drop)
    out = jax.block_until_ready(out)
    assert out.shape == (N, C)

    # eval-mode correctness check against a plain-JAX reference (no dropout);
    # loose tolerance for bf16 aggregation.
    out_eval = jax.block_until_ready(
        gcn_forward(x, edge_index, params, is_train=False))
    w1, b1, w2, b2 = params
    a_ref = _normalized_adjacency(edge_index, N)
    h1_ref = jnp.maximum(a_ref @ (x @ w1) + b1, 0.0)
    ref = a_ref @ (h1_ref @ w2) + b2
    assert jnp.allclose(out_eval, ref, atol=5e-2, rtol=5e-2)

    print("KERNEL_OK")
</pallas_src>

<mosaic_0001>
module attributes {stable_mosaic.version = 11 : i64} {
  func.func @_matmul_kernel(%arg0: i32, %arg1: i32, %arg2: memref<128x256xbf16, #tpu.memory_space<vmem>>, %arg3: memref<256x128xbf16, #tpu.memory_space<vmem>>, %arg4: memref<128x128xbf16, #tpu.memory_space<vmem>>, %arg5: memref<128x128xf32, #tpu.memory_space<vmem>>) attributes {dimension_semantics = [#tpu.dimension_semantics<parallel>, #tpu.dimension_semantics<arbitrary>], iteration_bounds = array<i64: 1, 1>, scalar_prefetch = 0 : i64, scratch_operands = 1 : i64, tpu.core_type = #tpu.core_type<tc>, window_params = [{transform_indices = @transform_0, window_bounds = array<i64: 128, 256>}, {transform_indices = @transform_1, window_bounds = array<i64: 256, 128>}, {transform_indices = @transform_2, window_bounds = array<i64: 128, 128>}]} {
    %c0_i32 = arith.constant 0 : i32
    %0 = arith.cmpi eq, %arg1, %c0_i32 : i32
    %1 = arith.extui %0 : i1 to i32
    %c0_i32_0 = arith.constant 0 : i32
    %2 = arith.cmpi ne, %1, %c0_i32_0 : i32
    scf.if %2 {
      %cst_10 = arith.constant 0.000000e+00 : f32
      %12 = vector.broadcast %cst_10 : f32 to vector<128x128xf32>
      %c0_11 = arith.constant 0 : index
      %c0_12 = arith.constant 0 : index
      %13 = vector.load %arg5[%c0_11, %c0_12] : memref<128x128xf32, #tpu.memory_space<vmem>>, vector<128x128xf32>
      tpu.vector_store %arg5[%c0_11, %c0_12], %12 {strides = array<i32>} : memref<128x128xf32, #tpu.memory_space<vmem>>, vector<128x128xf32>,
    } else {
    }
    %c0 = arith.constant 0 : index
    %c0_1 = arith.constant 0 : index
    %3 = vector.load %arg5[%c0, %c0_1] : memref<128x128xf32, #tpu.memory_space<vmem>>, vector<128x128xf32>
    %c0_2 = arith.constant 0 : index
    %c0_3 = arith.constant 0 : index
    %4 = vector.load %arg2[%c0_2, %c0_3] : memref<128x256xbf16, #tpu.memory_space<vmem>>, vector<128x256xbf16>
    %c0_4 = arith.constant 0 : index
    %c0_5 = arith.constant 0 : index
    %5 = vector.load %arg3[%c0_4, %c0_5] : memref<256x128xbf16, #tpu.memory_space<vmem>>, vector<256x128xbf16>
    %cst = arith.constant dense<0.000000e+00> : vector<128x128xf32>
    %6 = tpu.matmul %4, %5, %cst {dimension_numbers = #tpu.dot_dimension_numbers<[1], [0], [0], [1], [0, 0, 1, 1], [], []>} : vector<128x256xbf16>, vector<256x128xbf16>, vector<128x128xf32> -> vector<128x128xf32>
    %7 = arith.addf %3, %6 : vector<128x128xf32>
    %c0_6 = arith.constant 0 : index
    %c0_7 = arith.constant 0 : index
    %8 = vector.load %arg5[%c0_6, %c0_7] : memref<128x128xf32, #tpu.memory_space<vmem>>, vector<128x128xf32>
    tpu.vector_store %arg5[%c0_6, %c0_7], %7 {strides = array<i32>} : memref<128x128xf32, #tpu.memory_space<vmem>>, vector<128x128xf32>,
    %c0_i32_8 = arith.constant 0 : i32
    %9 = arith.cmpi eq, %arg1, %c0_i32_8 : i32
    %10 = arith.extui %9 : i1 to i32
    %c0_i32_9 = arith.constant 0 : i32
    %11 = arith.cmpi ne, %10, %c0_i32_9 : i32
    scf.if %11 {
      %c0_10 = arith.constant 0 : index
      %c0_11 = arith.constant 0 : index
      %12 = vector.load %arg5[%c0_10, %c0_11] : memref<128x128xf32, #tpu.memory_space<vmem>>, vector<128x128xf32>
      %13 = arith.truncf %12 : vector<128x128xf32> to vector<128x128xbf16>
      %c0_12 = arith.constant 0 : index
      %c0_13 = arith.constant 0 : index
      %14 = vector.load %arg4[%c0_12, %c0_13] : memref<128x128xbf16, #tpu.memory_space<vmem>>, vector<128x128xbf16>
      tpu.vector_store %arg4[%c0_12, %c0_13], %13 {strides = array<i32>} : memref<128x128xbf16, #tpu.memory_space<vmem>>, vector<128x128xbf16>,
    } else {
    }
    return
  }
  func.func @transform_0(%arg0: i32, %arg1: i32) -> (i32, i32) {
    %c0_i32 = arith.constant 0 : i32
    return %arg0, %arg1 : i32, i32
  }
  func.func @transform_1(%arg0: i32, %arg1: i32) -> (i32, i32) {
    %c0_i32 = arith.constant 0 : i32
    %c0_i32_0 = arith.constant 0 : i32
    return %arg1, %c0_i32 : i32, i32
  }
  func.func @transform_2(%arg0: i32, %arg1: i32) -> (i32, i32) {
    %c0_i32 = arith.constant 0 : i32
    %c0_i32_0 = arith.constant 0 : i32
    return %arg0, %c0_i32 : i32, i32
  }
}

</mosaic_0001>

<llo_original>
// kernel: tpu_custom_call.1
$region0: #{tpu_custom_call.1}
  #allocation0 [shape = 'u32[]', space=smem, size = 0x4, offset = 0x4, fixed_abs, tag = 'smem constant byte address 0x4 - core index']
  #allocation1 [shape = 'u32[144,128]{1,0:T(1,128)}', space=vmem, size = 0x12000, scoped, tag = 'internal scratch']
  #allocation2 [shape = 'f32[128,128]{1,0:T(8,128)}', space=vmem, size = 0x10000, scoped, tag = 'scratch operand']
  %s0 = inlined_call_operand.hbm [shape: bf16[128,256], index: 0, kind: input, shape index: {}]
  %s1 = inlined_call_operand.hbm [shape: bf16[256,128], index: 1, kind: input, shape index: {}]
  %s2 = inlined_call_operand.hbm [shape: bf16[128,128], index: 2, kind: output, shape index: {}]
  %s3 = sld [smem:[#allocation0]]
  $region34: #{tpu_custom_call.1} parent=0
    _
  %s5 = ssub.s32 1, %s3
  %s6 = scalar_select 0, %s5, %s3
  $region1: #{tpu_custom_call.1} parent=0
    #allocation3 [shape = 'u8[65536]{0}', space=vmem, size = 0x10000, scoped, tag = 'input window, operand 0, single buffered']
    #allocation4 [shape = 's32[1]{0}', space=sflag, size = 0x4, scoped, tag = 'scoped memory for tpu_custom_call.1']
    #allocation5 [shape = 's32[1]{0}', space=sflag, size = 0x4, scoped, tag = 'scoped memory for tpu_custom_call.1']
    #allocation6 [shape = 'u8[65536]{0}', space=vmem, size = 0x10000, scoped, tag = 'input window, operand 1, single buffered']
    #allocation7 [shape = 's32[1]{0}', space=sflag, size = 0x4, scoped, tag = 'scoped memory for tpu_custom_call.1']
    #allocation8 [shape = 'u8[32768]{0}', space=vmem, size = 0x8000, scoped, tag = 'output window, operand 0, single buffered']
    %7 = vsyncpa [#allocation4], 0
    %8 = vsyncpa [#allocation7], 0
    %9 = vsyncpa [#allocation5], 0
    // Predicated region
    $region2: #{tpu_custom_call.1} parent=1 // pred_check
      _
    $region3: #{tpu_custom_call.1} parent=1 // pred_check_branch
      %11 = sbr.rel (0) target = $region5
    $region4: #{tpu_custom_call.1} parent=1 // pred_region
      %s13 = ssub.s32 2048, 2048
      %14 = vsyncadd [#allocation4], %s13
      %s15 = sshll.u32 [#allocation3], 4
      %s16 = int_to_ptr.vmem [resolvable:$true] %s15
      %21 = dma.hbm_to_vmem [thread:$0]  %s0, 2048, %s16, [#allocation4], 128, 128, 8
    $region5: #{tpu_custom_call.1} parent=1 // pred_fallthru
      _
    // Predicated region
    $region6: #{tpu_custom_call.1} parent=1 // pred_check
      _
    $region7: #{tpu_custom_call.1} parent=1 // pred_check_branch
      %23 = sbr.rel (0) target = $region9
    $region8: #{tpu_custom_call.1} parent=1 // pred_region
      %s25 = ssub.s32 2048, 2048
      %26 = vsyncadd [#allocation7], %s25
      %s27 = sshll.u32 [#allocation6], 4
      %s28 = int_to_ptr.vmem [resolvable:$true] %s27
      %33 = dma.hbm_to_vmem [thread:$0]  %s1, 2048, %s28, [#allocation7], 64, 64, 4
    $region9: #{tpu_custom_call.1} parent=1 // pred_fallthru
      _
    // Predicated region
    $region10: #{tpu_custom_call.1} parent=1 // pred_check
      _
    $region11: #{tpu_custom_call.1} parent=1 // pred_check_branch
      %35 = sbr.rel (0) target = $region13
    $region12: #{tpu_custom_call.1} parent=1 // pred_region
      %36 = dma.done [#allocation4], 2048
    $region13: #{tpu_custom_call.1} parent=1 // pred_fallthru
      _
    // Predicated region
    $region14: #{tpu_custom_call.1} parent=1 // pred_check
      _
    $region15: #{tpu_custom_call.1} parent=1 // pred_check_branch
      %38 = sbr.rel (0) target = $region17
    $region16: #{tpu_custom_call.1} parent=1 // pred_region
      %39 = dma.done [#allocation7], 2048
    $region17: #{tpu_custom_call.1} parent=1 // pred_fallthru
      _
    %p41 = scmp.eq.s32.totalorder 0, 0
    // Predicated region
    $region18: #{tpu_custom_call.1} parent=1 // pred_check
      %p42 = pneg %p41
    $region19: #{tpu_custom_call.1} parent=1 // pred_check_branch
      %44 = sbr.rel (%p42) target = $region21
    $region20: #{tpu_custom_call.1} parent=1 // pred_region
      %45 = vst [vmem:[#allocation2] sm:$0xff] 0.0
      %46 = vst [vmem:[#allocation2 + $0x8] sm:$0xff] 0.0
      %47 = vst [vmem:[#allocation2 + $0x10] sm:$0xff] 0.0
      %48 = vst [vmem:[#allocation2 + $0x18] sm:$0xff] 0.0
      %49 = vst [vmem:[#allocation2 + $0x20] sm:$0xff] 0.0
      %50 = vst [vmem:[#allocation2 + $0x28] sm:$0xff] 0.0
      %51 = vst [vmem:[#allocation2 + $0x30] sm:$0xff] 0.0
      %52 = vst [vmem:[#allocation2 + $0x38] sm:$0xff] 0.0
      %53 = vst [vmem:[#allocation2 + $0x40] sm:$0xff] 0.0
      %54 = vst [vmem:[#allocation2 + $0x48] sm:$0xff] 0.0
      %55 = vst [vmem:[#allocation2 + $0x50] sm:$0xff] 0.0
      %56 = vst [vmem:[#allocation2 + $0x58] sm:$0xff] 0.0
      %57 = vst [vmem:[#allocation2 + $0x60] sm:$0xff] 0.0
      %58 = vst [vmem:[#allocation2 + $0x68] sm:$0xff] 0.0
      %59 = vst [vmem:[#allocation2 + $0x70] sm:$0xff] 0.0
      %60 = vst [vmem:[#allocation2 + $0x78] sm:$0xff] 0.0
    $region21: #{tpu_custom_call.1} parent=1 // pred_fallthru
      _
    %v61 = vld [vmem:[#allocation2] sm:$0xff]
    %v62 = vld [vmem:[#allocation2 + $0x8] sm:$0xff]
    %v63 = vld [vmem:[#allocation2 + $0x10] sm:$0xff]
    %v64 = vld [vmem:[#allocation2 + $0x18] sm:$0xff]
    %v65 = vld [vmem:[#allocation2 + $0x20] sm:$0xff]
    %v66 = vld [vmem:[#allocation2 + $0x28] sm:$0xff]
    %v67 = vld [vmem:[#allocation2 + $0x30] sm:$0xff]
    %v68 = vld [vmem:[#allocation2 + $0x38] sm:$0xff]
    %v69 = vld [vmem:[#allocation2 + $0x40] sm:$0xff]
    %v70 = vld [vmem:[#allocation2 + $0x48] sm:$0xff]
    %v71 = vld [vmem:[#allocation2 + $0x50] sm:$0xff]
    %v72 = vld [vmem:[#allocation2 + $0x58] sm:$0xff]
    %v73 = vld [vmem:[#allocation2 + $0x60] sm:$0xff]
    %v74 = vld [vmem:[#allocation2 + $0x68] sm:$0xff]
    %v75 = vld [vmem:[#allocation2 + $0x70] sm:$0xff]
    %v76 = vld [vmem:[#allocation2 + $0x78] sm:$0xff]
    %v77 = vld [vmem:[#allocation3] sm:$0xff]
    %v78 = vld [vmem:[#allocation3 + $0x8] sm:$0xff]
    %v79 = vld [vmem:[#allocation3 + $0x10] sm:$0xff]
    %v80 = vld [vmem:[#allocation3 + $0x18] sm:$0xff]
    %v81 = vld [vmem:[#allocation3 + $0x20] sm:$0xff]
    %v82 = vld [vmem:[#allocation3 + $0x28] sm:$0xff]
    %v83 = vld [vmem:[#allocation3 + $0x30] sm:$0xff]
    %v84 = vld [vmem:[#allocation3 + $0x38] sm:$0xff]
    %v85 = vld [vmem:[#allocation3 + $0x40] sm:$0xff]
    %v86 = vld [vmem:[#allocation3 + $0x48] sm:$0xff]
    %v87 = vld [vmem:[#allocation3 + $0x50] sm:$0xff]
    %v88 = vld [vmem:[#allocation3 + $0x58] sm:$0xff]
    %v89 = vld [vmem:[#allocation3 + $0x60] sm:$0xff]
    %v90 = vld [vmem:[#allocation3 + $0x68] sm:$0xff]
    %v91 = vld [vmem:[#allocation3 + $0x70] sm:$0xff]
    %v92 = vld [vmem:[#allocation3 + $0x78] sm:$0xff]
    %v93 = vld [vmem:[#allocation6] sm:$0xf]
    %v94 = vld [vmem:[#allocation6 + $0x4] sm:$0xf]
    %v95 = vld [vmem:[#allocation6 + $0x8] sm:$0xf]
    %v96 = vld [vmem:[#allocation6 + $0xc] sm:$0xf]
    %v97 = vld [vmem:[#allocation6 + $0x10] sm:$0xf]
    %v98 = vld [vmem:[#allocation6 + $0x14] sm:$0xf]
    %v99 = vld [vmem:[#allocation6 + $0x18] sm:$0xf]
    %v100 = vld [vmem:[#allocation6 + $0x1c] sm:$0xf]
    %v101 = vld [vmem:[#allocation6 + $0x20] sm:$0xf]
    %v102 = vld [vmem:[#allocation6 + $0x24] sm:$0xf]
    %v103 = vld [vmem:[#allocation6 + $0x28] sm:$0xf]
    %v104 = vld [vmem:[#allocation6 + $0x2c] sm:$0xf]
    %v105 = vld [vmem:[#allocation6 + $0x30] sm:$0xf]
    %v106 = vld [vmem:[#allocation6 + $0x34] sm:$0xf]
    %v107 = vld [vmem:[#allocation6 + $0x38] sm:$0xf]
    %v108 = vld [vmem:[#allocation6 + $0x3c] sm:$0xf]
    %v109 = vld [vmem:[#allocation6 + $0x40] sm:$0xf]
    %v110 = vld [vmem:[#allocation6 + $0x44] sm:$0xf]
    %v111 = vld [vmem:[#allocation6 + $0x48] sm:$0xf]
    %v112 = vld [vmem:[#allocation6 + $0x4c] sm:$0xf]
    %v113 = vld [vmem:[#allocation6 + $0x50] sm:$0xf]
    %v114 = vld [vmem:[#allocation6 + $0x54] sm:$0xf]
    %v115 = vld [vmem:[#allocation6 + $0x58] sm:$0xf]
    %v116 = vld [vmem:[#allocation6 + $0x5c] sm:$0xf]
    %v117 = vld [vmem:[#allocation6 + $0x60] sm:$0xf]
    %v118 = vld [vmem:[#allocation6 + $0x64] sm:$0xf]
    %v119 = vld [vmem:[#allocation6 + $0x68] sm:$0xf]
    %v120 = vld [vmem:[#allocation6 + $0x6c] sm:$0xf]
    %v121 = vld [vmem:[#allocation6 + $0x70] sm:$0xf]
    %v122 = vld [vmem:[#allocation6 + $0x74] sm:$0xf]
    %v123 = vld [vmem:[#allocation6 + $0x78] sm:$0xf]
    %v124 = vld [vmem:[#allocation6 + $0x7c] sm:$0xf]
    %v141 = vunpack.c.l.b16 %v77
    %v142 = vunpack.c.h.b16 %v77
    %v143 = vunpack.c.l.b16 %v78
    %v144 = vunpack.c.h.b16 %v78
    %v145 = vunpack.c.l.b16 %v79
    %v146 = vunpack.c.h.b16 %v79
    %v147 = vunpack.c.l.b16 %v80
    %v148 = vunpack.c.h.b16 %v80
    %v149 = vunpack.c.l.b16 %v81
    %v150 = vunpack.c.h.b16 %v81
    %v151 = vunpack.c.l.b16 %v82
    %v152 = vunpack.c.h.b16 %v82
    %v153 = vunpack.c.l.b16 %v83
    %v154 = vunpack.c.h.b16 %v83
    %v155 = vunpack.c.l.b16 %v84
    %v156 = vunpack.c.h.b16 %v84
    %v157 = vunpack.c.l.b16 %v85
    %v158 = vunpack.c.h.b16 %v85
    %v159 = vunpack.c.l.b16 %v86
    %v160 = vunpack.c.h.b16 %v86
    %v161 = vunpack.c.l.b16 %v87
    %v162 = vunpack.c.h.b16 %v87
    %v163 = vunpack.c.l.b16 %v88
    %v164 = vunpack.c.h.b16 %v88
    %v165 = vunpack.c.l.b16 %v89
    %v166 = vunpack.c.h.b16 %v89
    %v167 = vunpack.c.l.b16 %v90
    %v168 = vunpack.c.h.b16 %v90
    %v169 = vunpack.c.l.b16 %v91
    %v170 = vunpack.c.h.b16 %v91
    %v171 = vunpack.c.l.b16 %v92
    %v172 = vunpack.c.h.b16 %v92
    %v173 = vpack.c.b16 %v143, %v141
    %v174 = vpack.c.b16 %v144, %v142
    %v175 = vpack.c.b16 %v147, %v145
    %v176 = vpack.c.b16 %v148, %v146
    %v177 = vpack.c.b16 %v151, %v149
    %v178 = vpack.c.b16 %v152, %v150
    %v179 = vpack.c.b16 %v155, %v153
    %v180 = vpack.c.b16 %v156, %v154
    %v181 = vpack.c.b16 %v159, %v157
    %v182 = vpack.c.b16 %v160, %v158
    %v183 = vpack.c.b16 %v163, %v161
    %v184 = vpack.c.b16 %v164, %v162
    %v185 = vpack.c.b16 %v167, %v165
    %v186 = vpack.c.b16 %v168, %v166
    %v187 = vpack.c.b16 %v171, %v169
    %v188 = vpack.c.b16 %v172, %v170
    %v237 = vunpack.c.l.b16 %v93
    %v238 = vunpack.c.l.b16 %v94
    %v239 = vunpack.c.l.b16 %v95
    %v240 = vunpack.c.l.b16 %v96
    %v241 = vunpack.c.l.b16 %v97
    %v242 = vunpack.c.l.b16 %v98
    %v243 = vunpack.c.l.b16 %v99
    %v244 = vunpack.c.l.b16 %v100
    %v245 = vunpack.c.l.b16 %v101
    %v246 = vunpack.c.l.b16 %v102
    %v247 = vunpack.c.l.b16 %v103
    %v248 = vunpack.c.l.b16 %v104
    %v249 = vunpack.c.l.b16 %v105
    %v250 = vunpack.c.l.b16 %v106
    %v251 = vunpack.c.l.b16 %v107
    %v252 = vunpack.c.l.b16 %v108
    %v253 = vunpack.c.l.b16 %v109
    %v254 = vunpack.c.l.b16 %v110
    %v255 = vunpack.c.l.b16 %v111
    %v256 = vunpack.c.l.b16 %v112
    %v257 = vunpack.c.l.b16 %v113
    %v258 = vunpack.c.l.b16 %v114
    %v259 = vunpack.c.l.b16 %v115
    %v260 = vunpack.c.l.b16 %v116
    %v261 = vunpack.c.l.b16 %v117
    %v262 = vunpack.c.l.b16 %v118
    %v263 = vunpack.c.l.b16 %v119
    %v264 = vunpack.c.l.b16 %v120
    %v265 = vunpack.c.l.b16 %v121
    %v266 = vunpack.c.l.b16 %v122
    %v267 = vunpack.c.l.b16 %v123
    %v268 = vunpack.c.l.b16 %v124
    %v269 = vpack.c.b16 %v238, %v237
    %v270 = vpack.c.b16 %v240, %v239
    %v271 = vpack.c.b16 %v242, %v241
    %v272 = vpack.c.b16 %v244, %v243
    %v273 = vpack.c.b16 %v246, %v245
    %v274 = vpack.c.b16 %v248, %v247
    %v275 = vpack.c.b16 %v250, %v249
    %v276 = vpack.c.b16 %v252, %v251
    %v277 = vpack.c.b16 %v254, %v253
    %v278 = vpack.c.b16 %v256, %v255
    %v279 = vpack.c.b16 %v258, %v257
    %v280 = vpack.c.b16 %v260, %v259
    %v281 = vpack.c.b16 %v262, %v261
    %v282 = vpack.c.b16 %v264, %v263
    %v283 = vpack.c.b16 %v266, %v265
    %v284 = vpack.c.b16 %v268, %v267
    %301 = vmatprep.subr.bf16.mxu0 0
    %302 = vmatpush1.bf16.msra.mxu0 %v276
    %303 = vmatprep.subr.bf16.mxu0 0
    %304 = vmatpush1.bf16.msra.mxu0 %v275
    %305 = vmatprep.subr.bf16.mxu0 0
    %306 = vmatpush1.bf16.msra.mxu0 %v274
    %307 = vmatprep.subr.bf16.mxu0 0
    %308 = vmatpush1.bf16.msra.mxu0 %v273
    %309 = vmatprep.subr.bf16.mxu0 0
    %310 = vmatpush1.bf16.msra.mxu0 %v272
    %311 = vmatprep.subr.bf16.mxu0 0
    %312 = vmatpush1.bf16.msra.mxu0 %v271
    %313 = vmatprep.subr.bf16.mxu0 0
    %314 = vmatpush1.bf16.msra.mxu0 %v270
    %315 = vmatprep.subr.bf16.mxu0 0
    %316 = vmatpush1.bf16.msra.mxu0 %v269
    %317 = vmatprep.subr.bf16.mxu0 0
    %318 = vmatpush2.bf16.msra.mxu0 %v284
    %319 = vmatprep.subr.bf16.mxu0 0
    %320 = vmatpush2.bf16.msra.mxu0 %v283
    %321 = vmatprep.subr.bf16.mxu0 0
    %322 = vmatpush2.bf16.msra.mxu0 %v282
    %323 = vmatprep.subr.bf16.mxu0 0
    %324 = vmatpush2.bf16.msra.mxu0 %v281
    %325 = vmatprep.subr.bf16.mxu0 0
    %326 = vmatpush2.bf16.msra.mxu0 %v280
    %327 = vmatprep.subr.bf16.mxu0 0
    %328 = vmatpush2.bf16.msra.mxu0 %v279
    %329 = vmatprep.subr.bf16.mxu0 0
    %330 = vmatpush2.bf16.msra.mxu0 %v278
    %331 = vmatprep.subr.bf16.mxu0 0
    %332 = vmatpush2.bf16.msra.mxu0 %v277
    %333 = vmatprep.mubr.bf16.mxu0 %v174
    %334 = vmatmul.mubr.bf16.gmra.mxu0 %v173
    %v335 = vpop.f32.mrf.mxu0
    %v336 = vadd.f32 0.0, %v335
    %v337 = vpop.f32.mrf.mxu0
    %v338 = vpop.f32.mrf.mxu0
    %v339 = vadd.f32 0.0, %v338
    %v340 = vpop.f32.mrf.mxu0
    %341 = vmatprep.mubr.bf16.mxu0 %v176
    %342 = vmatmul.mubr.bf16.gmra.mxu0 %v175
    %v343 = vpop.f32.mrf.mxu0
    %v344 = vadd.f32 0.0, %v343
    %v345 = vpop.f32.mrf.mxu0
    %v346 = vpop.f32.mrf.mxu0
    %v347 = vadd.f32 0.0, %v346
    %v348 = vpop.f32.mrf.mxu0
    %349 = vmatprep.mubr.bf16.mxu0 %v178
    %350 = vmatmul.mubr.bf16.gmra.mxu0 %v177
    %v351 = vpop.f32.mrf.mxu0
    %v352 = vadd.f32 0.0, %v351
    %v353 = vpop.f32.mrf.mxu0
    %v354 = vpop.f32.mrf.mxu0
    %v355 = vadd.f32 0.0, %v354
    %v356 = vpop.f32.mrf.mxu0
    %357 = vmatprep.mubr.bf16.mxu0 %v180
    %358 = vmatmul.mubr.bf16.gmra.mxu0 %v179
    %v359 = vpop.f32.mrf.mxu0
    %v360 = vadd.f32 0.0, %v359
    %v361 = vpop.f32.mrf.mxu0
    %v362 = vpop.f32.mrf.mxu0
    %v363 = vadd.f32 0.0, %v362
    %v364 = vpop.f32.mrf.mxu0
    %365 = vmatprep.mubr.bf16.mxu0 %v182
    %366 = vmatmul.mubr.bf16.gmra.mxu0 %v181
    %v367 = vpop.f32.mrf.mxu0
    %v368 = vadd.f32 0.0, %v367
    %v369 = vpop.f32.mrf.mxu0
    %v370 = vpop.f32.mrf.mxu0
    %v371 = vadd.f32 0.0, %v370
    %v372 = vpop.f32.mrf.mxu0
    %373 = vmatprep.mubr.bf16.mxu0 %v184
    %374 = vmatmul.mubr.bf16.gmra.mxu0 %v183
    %v375 = vpop.f32.mrf.mxu0
    %v376 = vadd.f32 0.0, %v375
    %v377 = vpop.f32.mrf.mxu0
    %v378 = vpop.f32.mrf.mxu0
    %v379 = vadd.f32 0.0, %v378
    %v380 = vpop.f32.mrf.mxu0
    %381 = vmatprep.mubr.bf16.mxu0 %v186
    %382 = vmatmul.mubr.bf16.gmra.mxu0 %v185
    %v383 = vpop.f32.mrf.mxu0
    %v384 = vadd.f32 0.0, %v383
    %v385 = vpop.f32.mrf.mxu0
    %v386 = vpop.f32.mrf.mxu0
    %v387 = vadd.f32 0.0, %v386
    %v388 = vpop.f32.mrf.mxu0
    %389 = vmatprep.mubr.bf16.mxu0 %v188
    %390 = vmatmul.mubr.bf16.gmra.mxu0 %v187
    %v391 = vpop.f32.mrf.mxu0
    %v392 = vadd.f32 0.0, %v391
    %v393 = vpop.f32.mrf.mxu0
    %v394 = vpop.f32.mrf.mxu0
    %v395 = vadd.f32 0.0, %v394
    %v396 = vpop.f32.mrf.mxu0
    %397 = vdwg.mxu0
    %v398 = vadd.f32 %v61, %v336
    %v399 = vadd.f32 %v62, %v339
    %v400 = vadd.f32 %v63, %v344
    %v401 = vadd.f32 %v64, %v347
    %v402 = vadd.f32 %v65, %v352
    %v403 = vadd.f32 %v66, %v355
    %v404 = vadd.f32 %v67, %v360
    %v405 = vadd.f32 %v68, %v363
    %v406 = vadd.f32 %v69, %v368
    %v407 = vadd.f32 %v70, %v371
    %v408 = vadd.f32 %v71, %v376
    %v409 = vadd.f32 %v72, %v379
    %v410 = vadd.f32 %v73, %v384
    %v411 = vadd.f32 %v74, %v387
    %v412 = vadd.f32 %v75, %v392
    %v413 = vadd.f32 %v76, %v395
    %414 = vst [vmem:[#allocation2] sm:$0xff] %v398
    %415 = vst [vmem:[#allocation2 + $0x8] sm:$0xff] %v399
    %416 = vst [vmem:[#allocation2 + $0x10] sm:$0xff] %v400
    %417 = vst [vmem:[#allocation2 + $0x18] sm:$0xff] %v401
    %418 = vst [vmem:[#allocation2 + $0x20] sm:$0xff] %v402
    %419 = vst [vmem:[#allocation2 + $0x28] sm:$0xff] %v403
    %420 = vst [vmem:[#allocation2 + $0x30] sm:$0xff] %v404
    %421 = vst [vmem:[#allocation2 + $0x38] sm:$0xff] %v405
    %422 = vst [vmem:[#allocation2 + $0x40] sm:$0xff] %v406
    %423 = vst [vmem:[#allocation2 + $0x48] sm:$0xff] %v407
    %424 = vst [vmem:[#allocation2 + $0x50] sm:$0xff] %v408
    %425 = vst [vmem:[#allocation2 + $0x58] sm:$0xff] %v409
    %426 = vst [vmem:[#allocation2 + $0x60] sm:$0xff] %v410
    %427 = vst [vmem:[#allocation2 + $0x68] sm:$0xff] %v411
    %428 = vst [vmem:[#allocation2 + $0x70] sm:$0xff] %v412
    %429 = vst [vmem:[#allocation2 + $0x78] sm:$0xff] %v413
    // Predicated region
    $region22: #{tpu_custom_call.1} parent=1 // pred_check
      %p430 = pneg %p41
    $region23: #{tpu_custom_call.1} parent=1 // pred_check_branch
      %432 = sbr.rel (%p430) target = $region25
    $region24: #{tpu_custom_call.1} parent=1 // pred_region
      %v433 = vld [vmem:[#allocation2] sm:$0xff]
      %v434 = vld [vmem:[#allocation2 + $0x8] sm:$0xff]
      %v435 = vld [vmem:[#allocation2 + $0x10] sm:$0xff]
      %v436 = vld [vmem:[#allocation2 + $0x18] sm:$0xff]
      %v437 = vld [vmem:[#allocation2 + $0x20] sm:$0xff]
      %v438 = vld [vmem:[#allocation2 + $0x28] sm:$0xff]
      %v439 = vld [vmem:[#allocation2 + $0x30] sm:$0xff]
      %v440 = vld [vmem:[#allocation2 + $0x38] sm:$0xff]
      %v441 = vld [vmem:[#allocation2 + $0x40] sm:$0xff]
      %v442 = vld [vmem:[#allocation2 + $0x48] sm:$0xff]
      %v443 = vld [vmem:[#allocation2 + $0x50] sm:$0xff]
      %v444 = vld [vmem:[#allocation2 + $0x58] sm:$0xff]
      %v445 = vld [vmem:[#allocation2 + $0x60] sm:$0xff]
      %v446 = vld [vmem:[#allocation2 + $0x68] sm:$0xff]
      %v447 = vld [vmem:[#allocation2 + $0x70] sm:$0xff]
      %v448 = vld [vmem:[#allocation2 + $0x78] sm:$0xff]
      %v449 = vpack.c.bf16 %v434, %v433
      %v450 = vpack.c.bf16 %v436, %v435
      %v451 = vpack.c.bf16 %v438, %v437
      %v452 = vpack.c.bf16 %v440, %v439
      %v453 = vpack.c.bf16 %v442, %v441
      %v454 = vpack.c.bf16 %v444, %v443
      %v455 = vpack.c.bf16 %v446, %v445
      %v456 = vpack.c.bf16 %v448, %v447
      %v465 = vunpack.c.l.b16 %v449
      %v466 = vunpack.c.h.b16 %v449
      %v467 = vunpack.c.l.b16 %v450
      %v468 = vunpack.c.h.b16 %v450
      %v469 = vunpack.c.l.b16 %v451
      %v470 = vunpack.c.h.b16 %v451
      %v471 = vunpack.c.l.b16 %v452
      %v472 = vunpack.c.h.b16 %v452
      %v473 = vunpack.c.l.b16 %v453
      %v474 = vunpack.c.h.b16 %v453
      %v475 = vunpack.c.l.b16 %v454
      %v476 = vunpack.c.h.b16 %v454
      %v477 = vunpack.c.l.b16 %v455
      %v478 = vunpack.c.h.b16 %v455
      %v479 = vunpack.c.l.b16 %v456
      %v480 = vunpack.c.h.b16 %v456
      %v481 = vpack.c.b16 %v465, %v465
      %v482 = vpack.c.b16 %v466, %v466
      %v483 = vpack.c.b16 %v467, %v467
      %v484 = vpack.c.b16 %v468, %v468
      %v485 = vpack.c.b16 %v469, %v469
      %v486 = vpack.c.b16 %v470, %v470
      %v487 = vpack.c.b16 %v471, %v471
      %v488 = vpack.c.b16 %v472, %v472
      %v489 = vpack.c.b16 %v473, %v473
      %v490 = vpack.c.b16 %v474, %v474
      %v491 = vpack.c.b16 %v475, %v475
      %v492 = vpack.c.b16 %v476, %v476
      %v493 = vpack.c.b16 %v477, %v477
      %v494 = vpack.c.b16 %v478, %v478
      %v495 = vpack.c.b16 %v479, %v479
      %v496 = vpack.c.b16 %v480, %v480
      %513 = vst [vmem:[#allocation8] sm:$0xf] %v481
      %514 = vst [vmem:[#allocation8 + $0x4] sm:$0xf] %v482
      %515 = vst [vmem:[#allocation8 + $0x8] sm:$0xf] %v483
      %516 = vst [vmem:[#allocation8 + $0xc] sm:$0xf] %v484
      %517 = vst [vmem:[#allocation8 + $0x10] sm:$0xf] %v485
      %518 = vst [vmem:[#allocation8 + $0x14] sm:$0xf] %v486
      %519 = vst [vmem:[#allocation8 + $0x18] sm:$0xf] %v487
      %520 = vst [vmem:[#allocation8 + $0x1c] sm:$0xf] %v488
      %521 = vst [vmem:[#allocation8 + $0x20] sm:$0xf] %v489
      %522 = vst [vmem:[#allocation8 + $0x24] sm:$0xf] %v490
      %523 = vst [vmem:[#allocation8 + $0x28] sm:$0xf] %v491
      %524 = vst [vmem:[#allocation8 + $0x2c] sm:$0xf] %v492
      %525 = vst [vmem:[#allocation8 + $0x30] sm:$0xf] %v493
      %526 = vst [vmem:[#allocation8 + $0x34] sm:$0xf] %v494
      %527 = vst [vmem:[#allocation8 + $0x38] sm:$0xf] %v495
      %528 = vst [vmem:[#allocation8 + $0x3c] sm:$0xf] %v496
    $region25: #{tpu_custom_call.1} parent=1 // pred_fallthru
      _
    // Predicated region
    $region26: #{tpu_custom_call.1} parent=1 // pred_check
      _
    $region27: #{tpu_custom_call.1} parent=1 // pred_check_branch
      %530 = sbr.rel (0) target = $region29
    $region28: #{tpu_custom_call.1} parent=1 // pred_region
      %s532 = ssub.s32 1024, 1024
      %533 = vsyncadd [#allocation5], %s532
      %s534 = sshll.u32 [#allocation8], 4
      %s535 = int_to_ptr.vmem [resolvable:$true] %s534
      %540 = dma.vmem_to_hbm [thread:$0]  %s535, 1024, %s2, [#allocation5], 64, 64, 4
    $region29: #{tpu_custom_call.1} parent=1 // pred_fallthru
      _
    // Predicated region
    $region30: #{tpu_custom_call.1} parent=1 // pred_check
      _
    $region31: #{tpu_custom_call.1} parent=1 // pred_check_branch
      %542 = sbr.rel (0) target = $region33
    $region32: #{tpu_custom_call.1} parent=1 // pred_region
      %543 = dma.done [#allocation5], 1024
    $region33: #{tpu_custom_call.1} parent=1 // pred_fallthru
      _
    %544 = vsyncpa [#allocation4], 1
    %545 = vsyncpa [#allocation7], 1
    %546 = vsyncpa [#allocation5], 1

</llo_original>
